<compile_context>
chip_gen: v7x
topology: tpu7x:2x2x1
jax: 0.10.0
libtpu: 0.0.40
codegen_flags: <defaults>
</compile_context>

<pallas_src>
import functools
import math

import jax
import jax.numpy as jnp
from jax.experimental import pallas as pl
from jax.experimental.pallas import tpu as pltpu


# ------------------------------- kernel ------------------------------------ #

def _arc_margin_kernel(x_ref, w_ref, lbl_ref, o_ref,
                       *, cos_m, sin_m, th, mm, s, easy_margin):
    """One (batch-tile, class-tile) block of ArcMarginProduct, fully fused."""
    j = pl.program_id(1)
    tn = o_ref.shape[1]

    x = x_ref[...].astype(jnp.float32)            # (TB, IN)
    w = w_ref[...].astype(jnp.float32)            # (TN, IN)

    # F.normalize(..., dim=1, eps=1e-12): row / max(||row||, eps)
    #   == row * rsqrt(max(||row||^2, eps^2))   (rsqrt -> EUP, mul -> VPU)
    xn = x * jax.lax.rsqrt(
        jnp.maximum(jnp.sum(x * x, axis=-1, keepdims=True), 1e-24))
    wn = w * jax.lax.rsqrt(
        jnp.maximum(jnp.sum(w * w, axis=-1, keepdims=True), 1e-24))

    # cosine = xn @ wn.T  -> (TB, TN) on the MXU (contraction over in_features)
    cosine = jax.lax.dot_general(
        xn, wn, (((1,), (1,)), ((), ())),
        preferred_element_type=jnp.float32)

    # ArcFace margin
    sine = jnp.sqrt(jnp.maximum(1.0 - cosine * cosine, 0.0))
    phi = cosine * cos_m - sine * sin_m
    if easy_margin:
        phi = jnp.where(cosine > 0.0, phi, cosine)
    else:
        phi = jnp.where(cosine - th > 0.0, phi, cosine - mm)

    # one-hot(label) done in-kernel: compare global class index against label
    col = j * tn + jax.lax.broadcasted_iota(jnp.int32, cosine.shape, 1)
    one_hot = col == lbl_ref[...]                 # (TB, 1) broadcast -> (TB, TN)

    o_ref[...] = (jnp.where(one_hot, phi, cosine) * s).astype(o_ref.dtype)


# ------------------------------- wrapper ------------------------------------ #

def _round_up(v, m):
    return ((v + m - 1) // m) * m


def arc_margin_forward(x, weight, label, *, s=32.0, m=0.5, easy_margin=False):
    """ArcMarginProduct.forward.  x: (B, IN) f32, weight: (OUT, IN) f32,
    label: (B,) int.  Returns (B, OUT) f32."""
    b, in_features = x.shape
    out_features, in_w = weight.shape
    assert in_w == in_features, (in_w, in_features)

    cos_m = math.cos(m)
    sin_m = math.sin(m)
    th = math.cos(math.pi - m)
    mm = math.sin(math.pi - m) * m

    # Tile sizes: batch tile is the padded-to-8 batch (capped), class tile is a
    # lane-dense multiple of 128.  Pad instead of requiring exact divisibility.
    tb = min(_round_up(b, 8), 256)
    bp = _round_up(b, tb)
    tn = 256 if out_features >= 512 else 128
    outp = _round_up(out_features, tn)

    xp = jnp.pad(x, ((0, bp - b), (0, 0)))
    wp = jnp.pad(weight, ((0, outp - out_features), (0, 0)))
    lblp = jnp.pad(label.astype(jnp.int32), (0, bp - b)).reshape(bp, 1)

    grid = (bp // tb, outp // tn)

    kernel = functools.partial(
        _arc_margin_kernel,
        cos_m=cos_m, sin_m=sin_m, th=th, mm=mm, s=s, easy_margin=easy_margin)

    out = pl.pallas_call(
        kernel,
        grid=grid,
        in_specs=[
            pl.BlockSpec((tb, in_features), lambda i, j: (i, 0)),   # x rows
            pl.BlockSpec((tn, in_features), lambda i, j: (j, 0)),   # W rows
            pl.BlockSpec((tb, 1), lambda i, j: (i, 0)),             # labels
        ],
        out_specs=pl.BlockSpec((tb, tn), lambda i, j: (i, j)),
        out_shape=jax.ShapeDtypeStruct((bp, outp), jnp.float32),
        compiler_params=pltpu.CompilerParams(
            dimension_semantics=("parallel", "parallel")),
    )(xp, wp, lblp)

    return out[:b, :out_features]


# --------------------------- pure-JAX reference ----------------------------- #

def arc_margin_ref(x, weight, label, *, s=32.0, m=0.5, easy_margin=False):
    xn = x / jnp.maximum(jnp.linalg.norm(x, axis=1, keepdims=True), 1e-12)
    wn = weight / jnp.maximum(
        jnp.linalg.norm(weight, axis=1, keepdims=True), 1e-12)
    cosine = xn @ wn.T
    sine = jnp.sqrt(jnp.maximum(1.0 - cosine * cosine, 0.0))
    phi = cosine * math.cos(m) - sine * math.sin(m)
    if easy_margin:
        phi = jnp.where(cosine > 0.0, phi, cosine)
    else:
        th = math.cos(math.pi - m)
        mm = math.sin(math.pi - m) * m
        phi = jnp.where(cosine - th > 0.0, phi, cosine - mm)
    one_hot = jax.nn.one_hot(label, weight.shape[0], dtype=cosine.dtype)
    return (one_hot * phi + (1.0 - one_hot) * cosine) * s


# --------------------------------- main ------------------------------------- #

if __name__ == "__main__":
    # Module defaults: in_features=128, out_features=200; small batch.
    batch, in_features, out_features = 8, 128, 200
    s, m, easy_margin = 32.0, 0.5, False

    key = jax.random.PRNGKey(0)
    kx, kw, kl = jax.random.split(key, 3)

    x = jax.random.normal(kx, (batch, in_features), jnp.float32)
    # xavier_uniform_ on (out_features, in_features)
    bound = math.sqrt(6.0 / (in_features + out_features))
    weight = jax.random.uniform(kw, (out_features, in_features), jnp.float32,
                                -bound, bound)
    label = jax.random.randint(kl, (batch,), 0, out_features, jnp.int32)

    out = arc_margin_forward(x, weight, label, s=s, m=m,
                             easy_margin=easy_margin)
    out = jax.block_until_ready(out)

    ref = arc_margin_ref(x, weight, label, s=s, m=m, easy_margin=easy_margin)
    assert out.shape == ref.shape, (out.shape, ref.shape)
    if not jnp.allclose(out, ref, atol=1e-4, rtol=1e-4):
        raise AssertionError("Pallas output does not match reference")

    print("KERNEL_OK")
</pallas_src>

<mosaic_0001>
module attributes {stable_mosaic.version = 11 : i64} {
  func.func @_arc_margin_kernel(%arg0: i32, %arg1: i32, %arg2: memref<8x128xf32, #tpu.memory_space<vmem>>, %arg3: memref<128x128xf32, #tpu.memory_space<vmem>>, %arg4: memref<8x1xi32, #tpu.memory_space<vmem>>, %arg5: memref<8x128xf32, #tpu.memory_space<vmem>>) attributes {dimension_semantics = [#tpu.dimension_semantics<parallel>, #tpu.dimension_semantics<parallel>], iteration_bounds = array<i64: 1, 2>, scalar_prefetch = 0 : i64, scratch_operands = 0 : i64, tpu.core_type = #tpu.core_type<tc>, window_params = [{transform_indices = @transform_0, window_bounds = array<i64: 8, 128>}, {transform_indices = @transform_1, window_bounds = array<i64: 128, 128>}, {transform_indices = @transform_2, window_bounds = array<i64: 8, 1>}, {transform_indices = @transform_3, window_bounds = array<i64: 8, 128>}]} {
    %c0 = arith.constant 0 : index
    %c0_0 = arith.constant 0 : index
    %0 = vector.load %arg2[%c0, %c0_0] : memref<8x128xf32, #tpu.memory_space<vmem>>, vector<8x128xf32>
    %c0_1 = arith.constant 0 : index
    %c0_2 = arith.constant 0 : index
    %1 = vector.load %arg3[%c0_1, %c0_2] : memref<128x128xf32, #tpu.memory_space<vmem>>, vector<128x128xf32>
    %2 = arith.mulf %0, %0 : vector<8x128xf32>
    %cst = arith.constant dense<0.000000e+00> : vector<8xf32>
    %3 = vector.multi_reduction <add>, %2, %cst [1] : vector<8x128xf32> to vector<8xf32>
    %4 = vector.shape_cast %3 : vector<8xf32> to vector<8x1xf32>
    %cst_3 = arith.constant 1.000000e-24 : f32
    %5 = vector.broadcast %cst_3 : f32 to vector<8x1xf32>
    %6 = arith.maximumf %4, %5 : vector<8x1xf32>
    %7 = math.rsqrt %6 : vector<8x1xf32>
    %8 = vector.broadcast %7 : vector<8x1xf32> to vector<8x128xf32>
    %9 = arith.mulf %0, %8 : vector<8x128xf32>
    %10 = arith.mulf %1, %1 : vector<128x128xf32>
    %cst_4 = arith.constant dense<0.000000e+00> : vector<128xf32>
    %11 = vector.multi_reduction <add>, %10, %cst_4 [1] : vector<128x128xf32> to vector<128xf32>
    %12 = vector.shape_cast %11 : vector<128xf32> to vector<128x1xf32>
    %cst_5 = arith.constant 1.000000e-24 : f32
    %13 = vector.broadcast %cst_5 : f32 to vector<128x1xf32>
    %14 = arith.maximumf %12, %13 : vector<128x1xf32>
    %15 = math.rsqrt %14 : vector<128x1xf32>
    %16 = vector.broadcast %15 : vector<128x1xf32> to vector<128x128xf32>
    %17 = arith.mulf %1, %16 : vector<128x128xf32>
    %cst_6 = arith.constant dense<0.000000e+00> : vector<8x128xf32>
    %18 = tpu.matmul %9, %17, %cst_6 {dimension_numbers = #tpu.dot_dimension_numbers<[1], [1], [0], [0], [0, 0, 1, 0], [], []>} : vector<8x128xf32>, vector<128x128xf32>, vector<8x128xf32> -> vector<8x128xf32>
    %19 = arith.mulf %18, %18 : vector<8x128xf32>
    %cst_7 = arith.constant 1.000000e+00 : f32
    %20 = vector.broadcast %cst_7 : f32 to vector<8x128xf32>
    %21 = arith.subf %20, %19 : vector<8x128xf32>
    %cst_8 = arith.constant 0.000000e+00 : f32
    %22 = vector.broadcast %cst_8 : f32 to vector<8x128xf32>
    %23 = arith.maximumf %21, %22 : vector<8x128xf32>
    %24 = math.sqrt %23 : vector<8x128xf32>
    %cst_9 = arith.constant 0.87758255 : f32
    %25 = vector.broadcast %cst_9 : f32 to vector<8x128xf32>
    %26 = arith.mulf %18, %25 : vector<8x128xf32>
    %cst_10 = arith.constant 0.47942555 : f32
    %27 = vector.broadcast %cst_10 : f32 to vector<8x128xf32>
    %28 = arith.mulf %24, %27 : vector<8x128xf32>
    %29 = arith.subf %26, %28 : vector<8x128xf32>
    %cst_11 = arith.constant -0.87758255 : f32
    %30 = vector.broadcast %cst_11 : f32 to vector<8x128xf32>
    %31 = arith.subf %18, %30 : vector<8x128xf32>
    %cst_12 = arith.constant 0.000000e+00 : f32
    %32 = vector.broadcast %cst_12 : f32 to vector<8x128xf32>
    %33 = arith.cmpf ogt, %31, %32 : vector<8x128xf32>
    %cst_13 = arith.constant 0.239712775 : f32
    %34 = vector.broadcast %cst_13 : f32 to vector<8x128xf32>
    %35 = arith.subf %18, %34 : vector<8x128xf32>
    %36 = arith.select %33, %29, %35 : vector<8x128xi1>, vector<8x128xf32>
    %c128_i32 = arith.constant 128 : i32
    %37 = arith.muli %arg1, %c128_i32 : i32
    %38 = tpu.iota {dimensions = array<i32: 1>} : vector<8x128xi32>
    %39 = vector.broadcast %37 : i32 to vector<8x128xi32>
    %40 = arith.addi %39, %38 : vector<8x128xi32>
    %c0_14 = arith.constant 0 : index
    %c0_15 = arith.constant 0 : index
    %41 = vector.load %arg4[%c0_14, %c0_15] : memref<8x1xi32, #tpu.memory_space<vmem>>, vector<8x1xi32>
    %42 = vector.broadcast %41 : vector<8x1xi32> to vector<8x128xi32>
    %43 = arith.cmpi eq, %40, %42 : vector<8x128xi32>
    %44 = arith.select %43, %36, %18 : vector<8x128xi1>, vector<8x128xf32>
    %cst_16 = arith.constant 3.200000e+01 : f32
    %45 = vector.broadcast %cst_16 : f32 to vector<8x128xf32>
    %46 = arith.mulf %44, %45 : vector<8x128xf32>
    %c0_17 = arith.constant 0 : index
    %c0_18 = arith.constant 0 : index
    %47 = vector.load %arg5[%c0_17, %c0_18] : memref<8x128xf32, #tpu.memory_space<vmem>>, vector<8x128xf32>
    tpu.vector_store %arg5[%c0_17, %c0_18], %46 {strides = array<i32>} : memref<8x128xf32, #tpu.memory_space<vmem>>, vector<8x128xf32>,
    return
  }
  func.func @transform_0(%arg0: i32, %arg1: i32) -> (i32, i32) {
    %c0_i32 = arith.constant 0 : i32
    %c0_i32_0 = arith.constant 0 : i32
    return %arg0, %c0_i32 : i32, i32
  }
  func.func @transform_1(%arg0: i32, %arg1: i32) -> (i32, i32) {
    %c0_i32 = arith.constant 0 : i32
    %c0_i32_0 = arith.constant 0 : i32
    return %arg1, %c0_i32 : i32, i32
  }
  func.func @transform_2(%arg0: i32, %arg1: i32) -> (i32, i32) {
    %c0_i32 = arith.constant 0 : i32
    %c0_i32_0 = arith.constant 0 : i32
    return %arg0, %c0_i32 : i32, i32
  }
  func.func @transform_3(%arg0: i32, %arg1: i32) -> (i32, i32) {
    %c0_i32 = arith.constant 0 : i32
    return %arg0, %arg1 : i32, i32
  }
}

</mosaic_0001>

<llo_original>
// kernel: tpu_custom_call.1
$region0: #{tpu_custom_call.1}
  #allocation0 [shape = 'u32[]', space=smem, size = 0x4, offset = 0x4, fixed_abs, tag = 'smem constant byte address 0x4 - core index']
  #allocation1 [shape = 'u32[144,128]{1,0:T(1,128)}', space=vmem, size = 0x12000, scoped, tag = 'internal scratch']
  %s0 = inlined_call_operand.vmem [shape: f32[8,128], index: 0, kind: input, shape index: {}]
  %s1 = inlined_call_operand.hbm [shape: f32[256,128], index: 1, kind: input, shape index: {}]
  %s2 = inlined_call_operand.vmem [shape: s32[8,1], index: 2, kind: input, shape index: {}]
  %s3 = inlined_call_operand.hbm [shape: f32[8,256], index: 3, kind: output, shape index: {}]
  %s4 = sld [smem:[#allocation0]]
  $region49: #{tpu_custom_call.1} parent=0
    _
  %s6 = ssub.s32 1, %s4
  %s7 = scalar_select 0, %s6, %s4
  $region1: #{tpu_custom_call.1} parent=0
    #allocation2 [shape = 'u8[131072]{0}', space=vmem, size = 0x20000, scoped, tag = 'input window, operand 1']
    #allocation3 [shape = 's32[2]{0}', space=sflag, size = 0x8, scoped, tag = 'scoped memory for tpu_custom_call.1']
    #allocation4 [shape = 's32[2]{0}', space=sflag, size = 0x8, scoped, tag = 'scoped memory for tpu_custom_call.1']
    #allocation5 [shape = 'u8[8192]{0}', space=vmem, size = 0x2000, scoped, tag = 'output window, operand 0']
    %8 = vsyncpa [#allocation3], 0
    %s9 = scalar_lea.sflag [#allocation3], 1
    %10 = vsyncpa %s9, 0
    %11 = vsyncpa [#allocation4], 0
    %s12 = scalar_lea.sflag [#allocation4], 1
    %13 = vsyncpa %s12, 0
    loop: start=0, step=1, limit=4
    $region2: #{tpu_custom_call.1} parent=1 // loop_pre_header
      _
    $region3: #{tpu_custom_call.1} parent=1 // loop_header
      %s15 = sphi 0, %s19
      %p16 = scmp.ge.s32.totalorder %s15, 4
      %s22 = sphi 0, %s34
      %s23 = sphi 0, %s30
      %s24 = sphi 0, %s22
      %s25 = sphi 0, %s23
      %s26 = sphi 0, %s24
      %s27 = sphi 0, %s25
      %s37 = sphi 0, %s39
      %s40 = sphi 0, %s37
      %s41 = sphi 0, %s40
      %s57 = sphi 0, %s41
      %s63 = sphi 0, %s65
      %s66 = sphi 0, %s63
      %s67 = sphi 0, %s66
      %s83 = sphi 0, %s67
      %s89 = sphi 0, %s91
      %s92 = sphi 0, %s89
      %s93 = sphi 0, %s92
      %s109 = sphi 0, %s93
      %s117 = sphi 0, %s119
      %s120 = sphi 0, %s117
      %s121 = sphi 0, %s120
      %s137 = sphi 0, %s121
    $region4: #{tpu_custom_call.1} parent=1 // loop_header_branch
      %18 = sbr.rel (%p16) target = $region8
    $region5: #{tpu_custom_call.1} parent=1 // loop_body
      %s20 = ssub.s32 %s15, 1
      %s21 = ssub.s32 %s15, 2
      %s28 = sadd.s32 1, %s23
      %p29 = scmp.ge.s32.totalorder %s28, 2
      %s30 = scalar_select %p29, 0, %s28
      %s31 = sadd.s32 1, %s22
      %s32 = scalar_select %p29, %s31, %s22
      %p33 = scmp.ge.s32.totalorder %s32, 1
      %s34 = scalar_select %p33, 0, %s32
      %s35 = ssub.s32 %s22, %s34
      %p36 = scmp.eq.s32.totalorder %s35, 0
      %s38 = sadd.s32 %s37, 1
      %s39 = scalar_select %p36, %s37, %s38
      %p42 = pneg %p36
      %p43 = scmp.eq.s32.totalorder %s15, 1
      %p44 = por %p42, %p43
      %p45 = scmp.ne.s32.totalorder %s37, %s40
      %p46 = scmp.eq.s32.totalorder %s15, 0
      %p47 = por %p45, %p46
      %p48 = scmp.ne.s32.totalorder %s37, %s40
      %p49 = scmp.eq.s32.totalorder %s20, 1
      %p50 = por %p48, %p49
      %p51 = scmp.ne.s32.totalorder %s40, %s41
      %p52 = scmp.eq.s32.totalorder %s20, 0
      %p53 = por %p51, %p52
      %p54 = scmp.ne.s32.totalorder %s40, %s41
      %p55 = scmp.eq.s32.totalorder %s21, 1
      %p56 = por %p54, %p55
      %p58 = scmp.ne.s32.totalorder %s41, %s57
      %p59 = scmp.eq.s32.totalorder %s21, 0
      %p60 = por %p58, %p59
      %s61 = ssub.s32 %s23, %s30
      %p62 = scmp.eq.s32.totalorder %s61, 0
      %s64 = sadd.s32 %s63, 1
      %s65 = scalar_select %p62, %s63, %s64
      %p68 = pneg %p62
      %p69 = scmp.eq.s32.totalorder %s15, 1
      %p70 = por %p68, %p69
      %p71 = scmp.ne.s32.totalorder %s63, %s66
      %p72 = scmp.eq.s32.totalorder %s15, 0
      %p73 = por %p71, %p72
      %p74 = scmp.ne.s32.totalorder %s63, %s66
      %p75 = scmp.eq.s32.totalorder %s20, 1
      %p76 = por %p74, %p75
      %p77 = scmp.ne.s32.totalorder %s66, %s67
      %p78 = scmp.eq.s32.totalorder %s20, 0
      %p79 = por %p77, %p78
      %p80 = scmp.ne.s32.totalorder %s66, %s67
      %p81 = scmp.eq.s32.totalorder %s21, 1
      %p82 = por %p80, %p81
      %p84 = scmp.ne.s32.totalorder %s67, %s83
      %p85 = scmp.eq.s32.totalorder %s21, 0
      %p86 = por %p84, %p85
      %s87 = ssub.s32 %s22, %s34
      %p88 = scmp.eq.s32.totalorder %s87, 0
      %s90 = sadd.s32 %s89, 1
      %s91 = scalar_select %p88, %s89, %s90
      %p94 = pneg %p88
      %p95 = scmp.eq.s32.totalorder %s15, 1
      %p96 = por %p94, %p95
      %p97 = scmp.ne.s32.totalorder %s89, %s92
      %p98 = scmp.eq.s32.totalorder %s15, 0
      %p99 = por %p97, %p98
      %p100 = scmp.ne.s32.totalorder %s89, %s92
      %p101 = scmp.eq.s32.totalorder %s20, 1
      %p102 = por %p100, %p101
      %p103 = scmp.ne.s32.totalorder %s92, %s93
      %p104 = scmp.eq.s32.totalorder %s20, 0
      %p105 = por %p103, %p104
      %p106 = scmp.ne.s32.totalorder %s92, %s93
      %p107 = scmp.eq.s32.totalorder %s21, 1
      %p108 = por %p106, %p107
      %p110 = scmp.ne.s32.totalorder %s93, %s109
      %p111 = scmp.eq.s32.totalorder %s21, 0
      %p112 = por %p110, %p111
      %s113 = ssub.s32 %s22, %s34
      %s114 = ssub.s32 %s23, %s30
      %s115 = sor.u32 %s113, %s114
      %p116 = scmp.eq.s32.totalorder %s115, 0
      %s118 = sadd.s32 %s117, 1
      %s119 = scalar_select %p116, %s117, %s118
      %p122 = pneg %p116
      %p123 = scmp.eq.s32.totalorder %s15, 1
      %p124 = por %p122, %p123
      %p125 = scmp.ne.s32.totalorder %s117, %s120
      %p126 = scmp.eq.s32.totalorder %s15, 0
      %p127 = por %p125, %p126
      %p128 = scmp.ne.s32.totalorder %s117, %s120
      %p129 = scmp.eq.s32.totalorder %s20, 1
      %p130 = por %p128, %p129
      %p131 = scmp.ne.s32.totalorder %s120, %s121
      %p132 = scmp.eq.s32.totalorder %s20, 0
      %p133 = por %p131, %p132
      %p134 = scmp.ne.s32.totalorder %s120, %s121
      %p135 = scmp.eq.s32.totalorder %s21, 1
      %p136 = por %p134, %p135
      %p138 = scmp.ne.s32.totalorder %s121, %s137
      %p139 = scmp.eq.s32.totalorder %s21, 0
      %p140 = por %p138, %p139
      %p141 = scmp.le.s32.totalorder 1, %s15
      %p142 = scmp.lt.s32.totalorder %s15, 3
      %p143 = pnand %p141, %p142
      %p144 = pneg %p143
      // Predicated region
      $region9: #{tpu_custom_call.1} parent=5 // pred_check
        _
      $region10: #{tpu_custom_call.1} parent=5 // pred_check_branch
        %146 = sbr.rel (%p143) target = $region12
      $region11: #{tpu_custom_call.1} parent=5 // pred_region
        %s147 = ssub.s32 %s15, 1
        // Predicated region
        $region13: #{tpu_custom_call.1} parent=11 // pred_check
          %p148 = pneg %p53
        $region14: #{tpu_custom_call.1} parent=11 // pred_check_branch
          %150 = sbr.rel (%p148) target = $region16
        $region15: #{tpu_custom_call.1} parent=11 // pred_region
          %p151 = scmp.lt.s32.totalorder %s24, 0
          %s152 = scalar_select %p151, %s24, 0
          %s153 = smul.addr %s152, 8
          %s154 = scalar_lea.vmem %s0, %s153
        $region16: #{tpu_custom_call.1} parent=11 // pred_fallthru
          _
        // Predicated region
        $region17: #{tpu_custom_call.1} parent=11 // pred_check
          %p155 = pneg %p105
        $region18: #{tpu_custom_call.1} parent=11 // pred_check_branch
          %157 = sbr.rel (%p155) target = $region20
        $region19: #{tpu_custom_call.1} parent=11 // pred_region
          %p158 = scmp.lt.s32.totalorder %s24, 0
          %s159 = scalar_select %p158, %s24, 0
          %s160 = smul.addr %s159, 8
          %s161 = scalar_lea.vmem %s2, %s160
        $region20: #{tpu_custom_call.1} parent=11 // pred_fallthru
          _
      $region12: #{tpu_custom_call.1} parent=5 // pred_fallthru
        _
      %p162 = scmp.lt.s32.totalorder %s15, 2
      // Predicated region
      $region21: #{tpu_custom_call.1} parent=5 // pred_check
        %p163 = pneg %p162
      $region22: #{tpu_custom_call.1} parent=5 // pred_check_branch
        %165 = sbr.rel (%p163) target = $region24
      $region23: #{tpu_custom_call.1} parent=5 // pred_region
        // Predicated region
        $region25: #{tpu_custom_call.1} parent=23 // pred_check
          %p166 = pneg %p73
        $region26: #{tpu_custom_call.1} parent=23 // pred_check_branch
          %168 = sbr.rel (%p166) target = $region28
        $region27: #{tpu_custom_call.1} parent=23 // pred_region
          %s169 = sand.u32 %s63, 1
          %s170 = scalar_lea.sflag [#allocation3], %s169
          %s171 = sand.u32 %s63, 1
          %s172 = smul.addr %s171, 128
          %s173 = scalar_lea.vmem [#allocation2], %s172
          %s174 = smul.u32 16, %s23
          %s176 = ssub.s32 2048, 2048
          %177 = vsyncadd %s170, %s176
          %s178 = smul.addr %s174, 128
          %s179 = scalar_lea.hbm %s1, %s178
          %s180 = sshll.u32 %s173, 4
          %s181 = int_to_ptr.vmem [resolvable:$true] %s180
          %186 = dma.hbm_to_vmem [thread:$0]  %s179, 2048, %s181, %s170, 128, 128, 8
        $region28: #{tpu_custom_call.1} parent=23 // pred_fallthru
          _
      $region24: #{tpu_custom_call.1} parent=5 // pred_fallthru
        _
      %p187 = scmp.le.s32.totalorder 1, %s15
      %p188 = scmp.lt.s32.totalorder %s15, 3
      %p189 = pnand %p187, %p188
      %p190 = pneg %p189
      // Predicated region
      $region29: #{tpu_custom_call.1} parent=5 // pred_check
        _
      $region30: #{tpu_custom_call.1} parent=5 // pred_check_branch
        %192 = sbr.rel (%p189) target = $region32
      $region31: #{tpu_custom_call.1} parent=5 // pred_region
        %s193 = ssub.s32 %s15, 1
        %s194 = sand.u32 %s66, 1
        %s195 = scalar_lea.sflag [#allocation3], %s194
        %s196 = sand.u32 %s66, 1
        %s197 = smul.addr %s196, 128
        %s198 = scalar_lea.vmem [#allocation2], %s197
        // Predicated region
        $region33: #{tpu_custom_call.1} parent=31 // pred_check
          %p199 = pneg %p79
        $region34: #{tpu_custom_call.1} parent=31 // pred_check_branch
          %201 = sbr.rel (%p199) target = $region36
        $region35: #{tpu_custom_call.1} parent=31 // pred_region
          %202 = dma.done %s195, 2048
        $region36: #{tpu_custom_call.1} parent=31 // pred_fallthru
          _
        %p203 = scmp.lt.s32.totalorder %s24, 0
        %s204 = scalar_select %p203, %s24, 0
        %s205 = smul.addr %s204, 8
        %s206 = scalar_lea.vmem %s0, %s205
        %p207 = pneg %p53
        %p208 = pneg %p50
        %s209 = sand.u32 %s66, 1
        %s210 = scalar_lea.sflag [#allocation3], %s209
        %s211 = sand.u32 %s66, 1
        %s212 = smul.addr %s211, 128
        %s213 = scalar_lea.vmem [#allocation2], %s212
        %p214 = pneg %p79
        %p215 = pneg %p76
        %p216 = scmp.lt.s32.totalorder %s24, 0
        %s217 = scalar_select %p216, %s24, 0
        %s218 = smul.addr %s217, 8
        %s219 = scalar_lea.vmem %s2, %s218
        %p220 = pneg %p105
        %p221 = pneg %p102
        %p222 = pneg %p133
        %p223 = pneg %p130
        %s224 = sand.u32 %s120, 1
        %s225 = scalar_lea.sflag [#allocation4], %s224
        %s226 = sand.u32 %s120, 1
        %s227 = smul.addr %s226, 8
        %s228 = scalar_lea.vmem [#allocation5], %s227
        %p229 = scmp.lt.s32.totalorder %s24, 0
        %s230 = scalar_select %p229, %s24, 0
        %s231 = smul.addr %s230, 8
        %s232 = scalar_lea.vmem %s0, %s231
        %s233 = smul.u32 16, %s25
        %p234 = scmp.lt.s32.totalorder %s24, 0
        %s235 = scalar_select %p234, %s24, 0
        %s236 = smul.addr %s235, 8
        %s237 = scalar_lea.vmem %s2, %s236
        %v238 = vld [vmem:[%s232] sm:$0xff]
        %v239 = vld [vmem:[%s198] sm:$0xff]
        %v240 = vld [vmem:[%s198 + $0x8] sm:$0xff]
        %v241 = vld [vmem:[%s198 + $0x10] sm:$0xff]
        %v242 = vld [vmem:[%s198 + $0x18] sm:$0xff]
        %v243 = vld [vmem:[%s198 + $0x20] sm:$0xff]
        %v244 = vld [vmem:[%s198 + $0x28] sm:$0xff]
        %v245 = vld [vmem:[%s198 + $0x30] sm:$0xff]
        %v246 = vld [vmem:[%s198 + $0x38] sm:$0xff]
        %v247 = vld [vmem:[%s198 + $0x40] sm:$0xff]
        %v248 = vld [vmem:[%s198 + $0x48] sm:$0xff]
        %v249 = vld [vmem:[%s198 + $0x50] sm:$0xff]
        %v250 = vld [vmem:[%s198 + $0x58] sm:$0xff]
        %v251 = vld [vmem:[%s198 + $0x60] sm:$0xff]
        %v252 = vld [vmem:[%s198 + $0x68] sm:$0xff]
        %v253 = vld [vmem:[%s198 + $0x70] sm:$0xff]
        %v254 = vld [vmem:[%s198 + $0x78] sm:$0xff]
        %v255 = vmul.f32 %v238, %v238
        %256 = vadd.xlane.f32.xlu0 %v255
        %v257 = vpop.xlane.xlu0 %256
        %v258 = vmax.f32 %v257, 1e-24
        %v259 = vrsqrt.pop %v258
        %v260 = vmul.f32 %v238, %v259
        %v261 = vmul.f32 %v239, %v239
        %v262 = vmul.f32 %v240, %v240
        %v263 = vmul.f32 %v241, %v241
        %v264 = vmul.f32 %v242, %v242
        %v265 = vmul.f32 %v243, %v243
        %v266 = vmul.f32 %v244, %v244
        %v267 = vmul.f32 %v245, %v245
        %v268 = vmul.f32 %v246, %v246
        %v269 = vmul.f32 %v247, %v247
        %v270 = vmul.f32 %v248, %v248
        %v271 = vmul.f32 %v249, %v249
        %v272 = vmul.f32 %v250, %v250
        %v273 = vmul.f32 %v251, %v251
        %v274 = vmul.f32 %v252, %v252
        %v275 = vmul.f32 %v253, %v253
        %v276 = vmul.f32 %v254, %v254
        %277 = vadd.xlane.f32.xlu0 %v261
        %v278 = vpop.xlane.xlu0 %277
        %279 = vadd.xlane.f32.xlu0 %v262
        %v280 = vpop.xlane.xlu0 %279
        %281 = vadd.xlane.f32.xlu0 %v263
        %v282 = vpop.xlane.xlu0 %281
        %283 = vadd.xlane.f32.xlu0 %v264
        %v284 = vpop.xlane.xlu0 %283
        %285 = vadd.xlane.f32.xlu0 %v265
        %v286 = vpop.xlane.xlu0 %285
        %287 = vadd.xlane.f32.xlu0 %v266
        %v288 = vpop.xlane.xlu0 %287
        %289 = vadd.xlane.f32.xlu0 %v267
        %v290 = vpop.xlane.xlu0 %289
        %291 = vadd.xlane.f32.xlu0 %v268
        %v292 = vpop.xlane.xlu0 %291
        %293 = vadd.xlane.f32.xlu0 %v269
        %v294 = vpop.xlane.xlu0 %293
        %295 = vadd.xlane.f32.xlu0 %v270
        %v296 = vpop.xlane.xlu0 %295
        %297 = vadd.xlane.f32.xlu0 %v271
        %v298 = vpop.xlane.xlu0 %297
        %299 = vadd.xlane.f32.xlu0 %v272
        %v300 = vpop.xlane.xlu0 %299
        %301 = vadd.xlane.f32.xlu0 %v273
        %v302 = vpop.xlane.xlu0 %301
        %303 = vadd.xlane.f32.xlu0 %v274
        %v304 = vpop.xlane.xlu0 %303
        %305 = vadd.xlane.f32.xlu0 %v275
        %v306 = vpop.xlane.xlu0 %305
        %307 = vadd.xlane.f32.xlu0 %v276
        %v308 = vpop.xlane.xlu0 %307
        %v309 = vmax.f32 %v278, 1e-24
        %v310 = vmax.f32 %v280, 1e-24
        %v311 = vmax.f32 %v282, 1e-24
        %v312 = vmax.f32 %v284, 1e-24
        %v313 = vmax.f32 %v286, 1e-24
        %v314 = vmax.f32 %v288, 1e-24
        %v315 = vmax.f32 %v290, 1e-24
        %v316 = vmax.f32 %v292, 1e-24
        %v317 = vmax.f32 %v294, 1e-24
        %v318 = vmax.f32 %v296, 1e-24
        %v319 = vmax.f32 %v298, 1e-24
        %v320 = vmax.f32 %v300, 1e-24
        %v321 = vmax.f32 %v302, 1e-24
        %v322 = vmax.f32 %v304, 1e-24
        %v323 = vmax.f32 %v306, 1e-24
        %v324 = vmax.f32 %v308, 1e-24
        %v325 = vrsqrt.pop %v309
        %v326 = vrsqrt.pop %v310
        %v327 = vrsqrt.pop %v311
        %v328 = vrsqrt.pop %v312
        %v329 = vrsqrt.pop %v313
        %v330 = vrsqrt.pop %v314
        %v331 = vrsqrt.pop %v315
        %v332 = vrsqrt.pop %v316
        %v333 = vrsqrt.pop %v317
        %v334 = vrsqrt.pop %v318
        %v335 = vrsqrt.pop %v319
        %v336 = vrsqrt.pop %v320
        %v337 = vrsqrt.pop %v321
        %v338 = vrsqrt.pop %v322
        %v339 = vrsqrt.pop %v323
        %v340 = vrsqrt.pop %v324
        %v341 = vmul.f32 %v239, %v325
        %v342 = vmul.f32 %v240, %v326
        %v343 = vmul.f32 %v241, %v327
        %v344 = vmul.f32 %v242, %v328
        %v345 = vmul.f32 %v243, %v329
        %v346 = vmul.f32 %v244, %v330
        %v347 = vmul.f32 %v245, %v331
        %v348 = vmul.f32 %v246, %v332
        %v349 = vmul.f32 %v247, %v333
        %v350 = vmul.f32 %v248, %v334
        %v351 = vmul.f32 %v249, %v335
        %v352 = vmul.f32 %v250, %v336
        %v353 = vmul.f32 %v251, %v337
        %v354 = vmul.f32 %v252, %v338
        %v355 = vmul.f32 %v253, %v339
        %v356 = vmul.f32 %v254, %v340
        %357 = vmatprep.subr.mxu0 0.0
        %358 = vmatpush1.xpose.msra.mxu0 %v341
        %359 = vmatprep.subr.mxu0 0.0
        %360 = vmatpush1.xpose.msra.mxu0 %v342
        %361 = vmatprep.subr.mxu0 0.0
        %362 = vmatpush1.xpose.msra.mxu0 %v343
        %363 = vmatprep.subr.mxu0 0.0
        %364 = vmatpush1.xpose.msra.mxu0 %v344
        %365 = vmatprep.subr.mxu0 0.0
        %366 = vmatpush1.xpose.msra.mxu0 %v345
        %367 = vmatprep.subr.mxu0 0.0
        %368 = vmatpush1.xpose.msra.mxu0 %v346
        %369 = vmatprep.subr.mxu0 0.0
        %370 = vmatpush1.xpose.msra.mxu0 %v347
        %371 = vmatprep.subr.mxu0 0.0
        %372 = vmatpush1.xpose.msra.mxu0 %v348
        %373 = vmatprep.subr.mxu0 0.0
        %374 = vmatpush1.xpose.msra.mxu0 %v349
        %375 = vmatprep.subr.mxu0 0.0
        %376 = vmatpush1.xpose.msra.mxu0 %v350
        %377 = vmatprep.subr.mxu0 0.0
        %378 = vmatpush1.xpose.msra.mxu0 %v351
        %379 = vmatprep.subr.mxu0 0.0
        %380 = vmatpush1.xpose.msra.mxu0 %v352
        %381 = vmatprep.subr.mxu0 0.0
        %382 = vmatpush1.xpose.msra.mxu0 %v353
        %383 = vmatprep.subr.mxu0 0.0
        %384 = vmatpush1.xpose.msra.mxu0 %v354
        %385 = vmatprep.subr.mxu0 0.0
        %386 = vmatpush1.xpose.msra.mxu0 %v355
        %387 = vmatprep.subr.mxu0 0.0
        %388 = vmatpush1.xpose.msra.mxu0 %v356
        %389 = vmatprep.subr.mxu0 0.0
        %390 = vmatpush1.xpose.msra.mxu0 0.0
        %391 = vmatprep.subr.mxu0 0.0
        %392 = vmatpush1.xpose.msra.mxu0 0.0
        %393 = vmatprep.subr.mxu0 0.0
        %394 = vmatpush1.xpose.msra.mxu0 0.0
        %395 = vmatprep.subr.mxu0 0.0
        %396 = vmatpush1.xpose.msra.mxu0 0.0
        %397 = vmatprep.subr.mxu0 0.0
        %398 = vmatpush1.xpose.msra.mxu0 0.0
        %399 = vmatprep.subr.mxu0 0.0
        %400 = vmatpush1.xpose.msra.mxu0 0.0
        %401 = vmatprep.subr.mxu0 0.0
        %402 = vmatpush1.xpose.msra.mxu0 0.0
        %403 = vmatprep.subr.mxu0 0.0
        %404 = vmatpush1.xpose.msra.mxu0 0.0
        %405 = vmatprep.subr.mxu0 0.0
        %406 = vmatpush1.xpose.msra.mxu0 0.0
        %407 = vmatprep.subr.mxu0 0.0
        %408 = vmatpush1.xpose.msra.mxu0 0.0
        %409 = vmatprep.subr.mxu0 0.0
        %410 = vmatpush1.xpose.msra.mxu0 0.0
        %411 = vmatprep.subr.mxu0 0.0
        %412 = vmatpush1.xpose.msra.mxu0 0.0
        %413 = vmatprep.subr.mxu0 0.0
        %414 = vmatpush1.xpose.msra.mxu0 0.0
        %415 = vmatprep.subr.mxu0 0.0
        %416 = vmatpush1.xpose.msra.mxu0 0.0
        %417 = vmatprep.subr.mxu0 0.0
        %418 = vmatpush1.xpose.msra.mxu0 0.0
        %419 = vmatprep.subr.mxu0 0.0
        %420 = vmatpush1.xpose.msra.mxu0 0.0
        %421 = vmatprep.mubr.f32.mxu0 0.0
        %422 = vmatmul.mubr.f32.gmra.mrb[0].mxu0 %v260
        %v423 = vpop.f32.mrb[0].mxu0
        %v424 = vadd.f32 0.0, %v423
        %v425 = vpop.f32.mrb[0].mxu0
        %426 = vdwg.mxu0
        %v427 = vmul.f32 %v424, %v424
        %v428 = vsub.f32 1.0, %v427
        %v429 = vmax.f32 %v428, 0.0
        %v430 = vrsqrt.pop %v429
        %v431 = vmul.f32 %v429, %v430
        %vm432 = vcmp.eq.f32.partialorder %v429, inf
        %v433 = vsel %vm432, %v429, %v431
        %vm434 = vcmp.eq.f32.partialorder %v429, 0.0
        %v435 = vand.u32 %v429, 2147483648
        %v436 = vsel %vm434, %v435, %v433
        %v437 = vmul.f32 %v424, 0.87758255
        %v438 = vmul.f32 %v436, 0.47942555
        %v439 = vsub.f32 %v437, %v438
        %v440 = vsub.f32 %v424, -0.87758255
        %vm441 = vcmp.gt.f32.partialorder %v440, 0.0
        %v442 = vsub.f32 %v424, 0.23971277
        %v443 = vsel %vm441, %v439, %v442
        %s444 = smul.u32 %s25, 128
        %v445 = vlaneseq
        %v446 = vand.u32 %v445, 127
        %v447 = vstv %s444
        %v448 = vadd.s32 %v447, %v446
        %v449 = vld [vmem:[%s237] sm:$0xff]
        %450 = vset.pattern.permute.xlu0 0
        %451 = vperm.xlu0 %450, %v449
        %v452 = vpop.permute.xlu0 %451
        %vm453 = vcmp.eq.s32.totalorder %v448, %v452
        %v454 = vsel %vm453, %v443, %v424
        %v455 = vmul.f32 %v454, 32.0
        %456 = vst [vmem:[%s228] sm:$0xff] %v455
        %s457 = sand.u32 %s120, 1
        %s458 = scalar_lea.sflag [#allocation4], %s457
        %s459 = sand.u32 %s120, 1
        %s460 = smul.addr %s459, 8
        %s461 = scalar_lea.vmem [#allocation5], %s460
        // Predicated region
        $region37: #{tpu_custom_call.1} parent=31 // pred_check
          %p462 = pneg %p130
        $region38: #{tpu_custom_call.1} parent=31 // pred_check_branch
          %464 = sbr.rel (%p462) target = $region40
        $region39: #{tpu_custom_call.1} parent=31 // pred_region
          %s466 = ssub.s32 128, 128
          %467 = vsyncadd %s458, %s466
          %s468 = smul.addr %s24, 2
          %s469 = sadd.s32 %s25, %s468
          %s470 = smul.addr %s469, 128
          %s471 = scalar_lea.hbm %s3, %s470
          %s473 = sshll.u32 %s461, 4
          %s474 = int_to_ptr.vmem [resolvable:$true] %s473
          %476 = dma.vmem_to_hbm [thread:$0]  %s474, 128, %s471, %s458
        $region40: #{tpu_custom_call.1} parent=31 // pred_fallthru
          _
      $region32: #{tpu_custom_call.1} parent=5 // pred_fallthru
        _
      %p477 = scmp.le.s32.totalorder 2, %s15
      // Predicated region
      $region41: #{tpu_custom_call.1} parent=5 // pred_check
        %p478 = pneg %p477
      $region42: #{tpu_custom_call.1} parent=5 // pred_check_branch
        %480 = sbr.rel (%p478) target = $region44
      $region43: #{tpu_custom_call.1} parent=5 // pred_region
        %s481 = ssub.s32 %s15, 2
        // Predicated region
        $region45: #{tpu_custom_call.1} parent=43 // pred_check
          %p482 = pneg %p136
        $region46: #{tpu_custom_call.1} parent=43 // pred_check_branch
          %484 = sbr.rel (%p482) target = $region48
        $region47: #{tpu_custom_call.1} parent=43 // pred_region
          %s485 = sand.u32 %s121, 1
          %s486 = scalar_lea.sflag [#allocation4], %s485
          %s487 = sand.u32 %s121, 1
          %s488 = smul.addr %s487, 8
          %s489 = scalar_lea.vmem [#allocation5], %s488
          %490 = dma.done %s486, 128
        $region48: #{tpu_custom_call.1} parent=43 // pred_fallthru
          _
      $region44: #{tpu_custom_call.1} parent=5 // pred_fallthru
        _
    $region6: #{tpu_custom_call.1} parent=1 // loop_footer
      %s19 = sadd.s32 1, %s15
    $region7: #{tpu_custom_call.1} parent=1 // loop_footer_branch
      %14 = sbr.rel target = $region3
    $region8: #{tpu_custom_call.1} parent=1 // loop_exit
      _
    %491 = vsyncpa [#allocation3], 1
    %s492 = scalar_lea.sflag [#allocation3], 1
    %493 = vsyncpa %s492, 1
    %494 = vsyncpa [#allocation4], 1
    %s495 = scalar_lea.sflag [#allocation4], 1
    %496 = vsyncpa %s495, 1

</llo_original>
